<compile_context>
chip_gen: v7x
topology: tpu7x:2x2x1
jax: 0.10.0
libtpu: 0.0.40
codegen_flags: <defaults>
</compile_context>

<pallas_src>
import functools

import numpy as np
import jax
import jax.numpy as jnp
from jax.experimental import pallas as pl
from jax.experimental.pallas import tpu as pltpu


def _round_up(x, m):
    return ((x + m - 1) // m) * m


# ----------------------------- Pallas kernel -----------------------------

def _path_drop_kernel(x_ref, scale_ref, out_ref, *, inv_keep):
    # scale_ref: (tile_n, 1) exact 0/1 keep flag per node; broadcast over the lane dim.
    scale = scale_ref[...].astype(jnp.float32) * inv_keep               # (tile_n, 1)
    out_ref[...] = (x_ref[...].astype(jnp.float32) * scale).astype(out_ref.dtype)


def graph_path_drop_apply(x, scale01, keep_prob, *, tile_n=512, tile_d=1024):
    """x: (N, D); scale01: (N, 1) float 0/1 per-node keep flag."""
    N, D = x.shape
    inv_keep = float(1.0 / keep_prob)

    # --- feature tiling: lane-dense multiple of 128 when possible, else full dim ---
    if D % 128 == 0:
        tile_d = min(_round_up(tile_d, 128), D)
    else:
        # full-dim block (allowed: last block dim == full array dim)
        tile_d = D

    # --- row tiling: multiple of 16 sublanes (bf16-safe), capped by N and VMEM ---
    sub = 16
    tile_n = min(tile_n, _round_up(N, sub))
    tile_n = max(sub, _round_up(tile_n, sub))
    # keep each x/out tile around <= 2 MiB so double-buffered in/out fits comfortably
    max_elems = (2 * 1024 * 1024) // max(1, x.dtype.itemsize)
    if tile_n * tile_d > max_elems:
        tile_n = max(sub, ((max_elems // tile_d) // sub) * sub)

    grid = (pl.cdiv(N, tile_n), pl.cdiv(D, tile_d))
    kernel = functools.partial(_path_drop_kernel, inv_keep=inv_keep)

    out = pl.pallas_call(
        kernel,
        out_shape=jax.ShapeDtypeStruct((N, D), x.dtype),
        grid_spec=pltpu.PrefetchScalarGridSpec(
            num_scalar_prefetch=0,
            grid=grid,
            in_specs=[
                pl.BlockSpec((tile_n, tile_d), lambda i, j: (i, j)),
                pl.BlockSpec((tile_n, 1), lambda i, j: (i, 0)),
            ],
            out_specs=pl.BlockSpec((tile_n, tile_d), lambda i, j: (i, j)),
        ),
        compiler_params=pltpu.CompilerParams(
            dimension_semantics=("parallel", "parallel"),
            vmem_limit_bytes=64 * 1024 * 1024,
        ),
    )(x, scale01.astype(jnp.float32))
    return out


# ----------------------------- Module-equivalent wrapper -----------------------------

class GraphPathDrop:
    """JAX/Pallas equivalent of equiformer GraphPathDrop (sample-wise stochastic depth
    for graph data: one keep/drop decision per graph, applied to all of its nodes)."""

    def __init__(self, drop_prob=None):
        self.drop_prob = drop_prob

    def __call__(self, x, batch, *, key, training=True, num_graphs=None):
        if (not training) or (self.drop_prob is None) or float(self.drop_prob) == 0.0:
            return x
        keep_prob = 1.0 - float(self.drop_prob)
        if num_graphs is None:
            # matches torch: batch.max() + 1  (concrete here; pass num_graphs under jit)
            num_graphs = int(jnp.max(batch)) + 1
        # Per-graph Bernoulli(keep_prob): identical in law to floor(keep_prob + U[0,1)).
        keep01 = jax.random.bernoulli(key, p=keep_prob, shape=(num_graphs,))
        # Tiny per-node gather of the 0/1 flag (glue; negligible HBM traffic vs x).
        scale01 = keep01.astype(jnp.float32)[batch][:, None]            # (N, 1)
        return graph_path_drop_apply(x, scale01, keep_prob)

    def __repr__(self):
        return "GraphPathDrop(drop_prob={})".format(self.drop_prob)


# ----------------------------- demo / check -----------------------------

if __name__ == "__main__":
    key = jax.random.PRNGKey(0)
    kx, kdrop = jax.random.split(key)

    num_graphs = 4
    nodes_per_graph = 24
    num_nodes = num_graphs * nodes_per_graph          # 96 nodes
    hidden = 32
    drop_prob = 0.3

    x = jax.random.normal(kx, (num_nodes, hidden), dtype=jnp.float32)
    batch = jnp.repeat(jnp.arange(num_graphs, dtype=jnp.int32), nodes_per_graph)

    module = GraphPathDrop(drop_prob)
    out = module(x, batch, key=kdrop, training=True)
    out = jax.block_until_ready(out)

    # pure-JAX reference (same key => same per-graph Bernoulli draw)
    keep_prob = 1.0 - drop_prob
    keep01 = jax.random.bernoulli(kdrop, p=keep_prob, shape=(num_graphs,))
    drop_vals = keep01.astype(jnp.float32) / keep_prob                  # (num_graphs,)
    ref = x * drop_vals[batch][:, None]
    np.testing.assert_allclose(np.asarray(out), np.asarray(ref), rtol=1e-6, atol=1e-6)

    # ragged / non-aligned shape check (N not multiple of 16, D not multiple of 128)
    kx2, kd2 = jax.random.split(kdrop)
    N2, D2, G2 = 103, 48, 5
    x2 = jax.random.normal(kx2, (N2, D2), dtype=jnp.float32)
    batch2 = jnp.clip(jnp.arange(N2, dtype=jnp.int32) // ((N2 + G2 - 1) // G2), 0, G2 - 1)
    out2 = jax.block_until_ready(module(x2, batch2, key=kd2, training=True))
    keep01_2 = jax.random.bernoulli(kd2, p=keep_prob, shape=(G2,))
    ref2 = x2 * (keep01_2.astype(jnp.float32) / keep_prob)[batch2][:, None]
    np.testing.assert_allclose(np.asarray(out2), np.asarray(ref2), rtol=1e-6, atol=1e-6)

    # eval mode / drop_prob==0 passthrough
    out_eval = module(x, batch, key=kdrop, training=False)
    np.testing.assert_allclose(np.asarray(out_eval), np.asarray(x))
    out_p0 = GraphPathDrop(0.0)(x, batch, key=kdrop, training=True)
    np.testing.assert_allclose(np.asarray(out_p0), np.asarray(x))

    print("KERNEL_OK")
</pallas_src>

<mosaic_0001>
module attributes {stable_mosaic.version = 11 : i64} {
  func.func @_path_drop_kernel(%arg0: i32, %arg1: i32, %arg2: memref<96x32xf32, #tpu.memory_space<vmem>>, %arg3: memref<96x1xf32, #tpu.memory_space<vmem>>, %arg4: memref<96x32xf32, #tpu.memory_space<vmem>>) attributes {dimension_semantics = [#tpu.dimension_semantics<parallel>, #tpu.dimension_semantics<parallel>], iteration_bounds = array<i64: 1, 1>, scalar_prefetch = 0 : i64, scratch_operands = 0 : i64, tpu.core_type = #tpu.core_type<tc>, window_params = [{transform_indices = @transform_0, window_bounds = array<i64: 96, 32>}, {transform_indices = @transform_1, window_bounds = array<i64: 96, 1>}, {transform_indices = @transform_2, window_bounds = array<i64: 96, 32>}]} {
    %c0 = arith.constant 0 : index
    %c0_0 = arith.constant 0 : index
    %0 = vector.load %arg3[%c0, %c0_0] : memref<96x1xf32, #tpu.memory_space<vmem>>, vector<96x1xf32>
    %cst = arith.constant 1.42857146 : f32
    %1 = vector.broadcast %cst : f32 to vector<96x1xf32>
    %2 = arith.mulf %0, %1 : vector<96x1xf32>
    %c0_1 = arith.constant 0 : index
    %c0_2 = arith.constant 0 : index
    %3 = vector.load %arg2[%c0_1, %c0_2] : memref<96x32xf32, #tpu.memory_space<vmem>>, vector<96x32xf32>
    %4 = vector.broadcast %2 : vector<96x1xf32> to vector<96x32xf32>
    %5 = arith.mulf %3, %4 : vector<96x32xf32>
    %c0_3 = arith.constant 0 : index
    %c0_4 = arith.constant 0 : index
    %6 = vector.load %arg4[%c0_3, %c0_4] : memref<96x32xf32, #tpu.memory_space<vmem>>, vector<96x32xf32>
    tpu.vector_store %arg4[%c0_3, %c0_4], %5 {strides = array<i32>} : memref<96x32xf32, #tpu.memory_space<vmem>>, vector<96x32xf32>,
    return
  }
  func.func @transform_0(%arg0: i32, %arg1: i32) -> (i32, i32) {
    %c0_i32 = arith.constant 0 : i32
    return %arg0, %arg1 : i32, i32
  }
  func.func @transform_1(%arg0: i32, %arg1: i32) -> (i32, i32) {
    %c0_i32 = arith.constant 0 : i32
    %c0_i32_0 = arith.constant 0 : i32
    return %arg0, %c0_i32 : i32, i32
  }
  func.func @transform_2(%arg0: i32, %arg1: i32) -> (i32, i32) {
    %c0_i32 = arith.constant 0 : i32
    return %arg0, %arg1 : i32, i32
  }
}

</mosaic_0001>

<llo_original>
// kernel: tpu_custom_call.1
$region0: #{tpu_custom_call.1}
  #allocation0 [shape = 'u32[]', space=smem, size = 0x4, offset = 0x4, fixed_abs, tag = 'smem constant byte address 0x4 - core index']
  #allocation1 [shape = 'u32[144,128]{1,0:T(1,128)}', space=vmem, size = 0x12000, scoped, tag = 'internal scratch']
  %s0 = inlined_call_operand.hbm [shape: f32[96,32], index: 0, kind: input, shape index: {}]
  %s1 = inlined_call_operand.hbm [shape: f32[96,1], index: 1, kind: input, shape index: {}]
  %s2 = inlined_call_operand.hbm [shape: f32[96,32], index: 2, kind: output, shape index: {}]
  %s3 = sld [smem:[#allocation0]]
  $region26: #{tpu_custom_call.1} parent=0
    _
  %s5 = ssub.s32 1, %s3
  %s6 = scalar_select 0, %s5, %s3
  $region1: #{tpu_custom_call.1} parent=0
    #allocation2 [shape = 'u8[49152]{0}', space=vmem, size = 0xc000, scoped, tag = 'input window, operand 0, single buffered']
    #allocation3 [shape = 's32[1]{0}', space=sflag, size = 0x4, scoped, tag = 'scoped memory for tpu_custom_call.1']
    #allocation4 [shape = 's32[1]{0}', space=sflag, size = 0x4, scoped, tag = 'scoped memory for tpu_custom_call.1']
    #allocation5 [shape = 'u8[49152]{0}', space=vmem, size = 0xc000, scoped, tag = 'input window, operand 1, single buffered']
    #allocation6 [shape = 's32[1]{0}', space=sflag, size = 0x4, scoped, tag = 'scoped memory for tpu_custom_call.1']
    #allocation7 [shape = 'u8[49152]{0}', space=vmem, size = 0xc000, scoped, tag = 'output window, operand 0, single buffered']
    %7 = vsyncpa [#allocation3], 0
    %8 = vsyncpa [#allocation6], 0
    %9 = vsyncpa [#allocation4], 0
    // Predicated region
    $region2: #{tpu_custom_call.1} parent=1 // pred_check
      _
    $region3: #{tpu_custom_call.1} parent=1 // pred_check_branch
      %11 = sbr.rel (0) target = $region5
    $region4: #{tpu_custom_call.1} parent=1 // pred_region
      %s13 = ssub.s32 1536, 1536
      %14 = vsyncadd [#allocation3], %s13
      %s15 = sshll.u32 [#allocation2], 4
      %s16 = int_to_ptr.vmem [resolvable:$true] %s15
      %21 = dma.hbm_to_vmem [thread:$0]  %s0, 1536, %s16, [#allocation3], 128, 128, 8
    $region5: #{tpu_custom_call.1} parent=1 // pred_fallthru
      _
    // Predicated region
    $region6: #{tpu_custom_call.1} parent=1 // pred_check
      _
    $region7: #{tpu_custom_call.1} parent=1 // pred_check_branch
      %23 = sbr.rel (0) target = $region9
    $region8: #{tpu_custom_call.1} parent=1 // pred_region
      %s25 = ssub.s32 1536, 1536
      %26 = vsyncadd [#allocation6], %s25
      %s27 = sshll.u32 [#allocation5], 4
      %s28 = int_to_ptr.vmem [resolvable:$true] %s27
      %33 = dma.hbm_to_vmem [thread:$0]  %s1, 1536, %s28, [#allocation6], 128, 128, 8
    $region9: #{tpu_custom_call.1} parent=1 // pred_fallthru
      _
    // Predicated region
    $region10: #{tpu_custom_call.1} parent=1 // pred_check
      _
    $region11: #{tpu_custom_call.1} parent=1 // pred_check_branch
      %35 = sbr.rel (0) target = $region13
    $region12: #{tpu_custom_call.1} parent=1 // pred_region
      %36 = dma.done [#allocation3], 1536
    $region13: #{tpu_custom_call.1} parent=1 // pred_fallthru
      _
    // Predicated region
    $region14: #{tpu_custom_call.1} parent=1 // pred_check
      _
    $region15: #{tpu_custom_call.1} parent=1 // pred_check_branch
      %38 = sbr.rel (0) target = $region17
    $region16: #{tpu_custom_call.1} parent=1 // pred_region
      %39 = dma.done [#allocation6], 1536
    $region17: #{tpu_custom_call.1} parent=1 // pred_fallthru
      _
    %v40 = vld [vmem:[#allocation5] sm:$0xff]
    %v41 = vld [vmem:[#allocation5 + $0x8] sm:$0xff]
    %v42 = vld [vmem:[#allocation5 + $0x10] sm:$0xff]
    %v43 = vld [vmem:[#allocation5 + $0x18] sm:$0xff]
    %v44 = vld [vmem:[#allocation5 + $0x20] sm:$0xff]
    %v45 = vld [vmem:[#allocation5 + $0x28] sm:$0xff]
    %v46 = vld [vmem:[#allocation5 + $0x30] sm:$0xff]
    %v47 = vld [vmem:[#allocation5 + $0x38] sm:$0xff]
    %v48 = vld [vmem:[#allocation5 + $0x40] sm:$0xff]
    %v49 = vld [vmem:[#allocation5 + $0x48] sm:$0xff]
    %v50 = vld [vmem:[#allocation5 + $0x50] sm:$0xff]
    %v51 = vld [vmem:[#allocation5 + $0x58] sm:$0xff]
    %v52 = vmul.f32 %v40, 1.4285715
    %v53 = vmul.f32 %v41, 1.4285715
    %v54 = vmul.f32 %v42, 1.4285715
    %v55 = vmul.f32 %v43, 1.4285715
    %v56 = vmul.f32 %v44, 1.4285715
    %v57 = vmul.f32 %v45, 1.4285715
    %v58 = vmul.f32 %v46, 1.4285715
    %v59 = vmul.f32 %v47, 1.4285715
    %v60 = vmul.f32 %v48, 1.4285715
    %v61 = vmul.f32 %v49, 1.4285715
    %v62 = vmul.f32 %v50, 1.4285715
    %v63 = vmul.f32 %v51, 1.4285715
    %v64 = vld [vmem:[#allocation2] sm:$0xff]
    %v65 = vld [vmem:[#allocation2 + $0x8] sm:$0xff]
    %v66 = vld [vmem:[#allocation2 + $0x10] sm:$0xff]
    %v67 = vld [vmem:[#allocation2 + $0x18] sm:$0xff]
    %v68 = vld [vmem:[#allocation2 + $0x20] sm:$0xff]
    %v69 = vld [vmem:[#allocation2 + $0x28] sm:$0xff]
    %v70 = vld [vmem:[#allocation2 + $0x30] sm:$0xff]
    %v71 = vld [vmem:[#allocation2 + $0x38] sm:$0xff]
    %v72 = vld [vmem:[#allocation2 + $0x40] sm:$0xff]
    %v73 = vld [vmem:[#allocation2 + $0x48] sm:$0xff]
    %v74 = vld [vmem:[#allocation2 + $0x50] sm:$0xff]
    %v75 = vld [vmem:[#allocation2 + $0x58] sm:$0xff]
    %77 = vset.pattern.permute.xlu0 0
    %78 = vperm.xlu0 %77, %v52
    %v79 = vpop.permute.xlu0 %78
    %82 = vset.pattern.permute.xlu0 0
    %83 = vperm.xlu0 %82, %v53
    %v84 = vpop.permute.xlu0 %83
    %87 = vset.pattern.permute.xlu0 0
    %88 = vperm.xlu0 %87, %v54
    %v89 = vpop.permute.xlu0 %88
    %92 = vset.pattern.permute.xlu0 0
    %93 = vperm.xlu0 %92, %v55
    %v94 = vpop.permute.xlu0 %93
    %97 = vset.pattern.permute.xlu0 0
    %98 = vperm.xlu0 %97, %v56
    %v99 = vpop.permute.xlu0 %98
    %102 = vset.pattern.permute.xlu0 0
    %103 = vperm.xlu0 %102, %v57
    %v104 = vpop.permute.xlu0 %103
    %107 = vset.pattern.permute.xlu0 0
    %108 = vperm.xlu0 %107, %v58
    %v109 = vpop.permute.xlu0 %108
    %112 = vset.pattern.permute.xlu0 0
    %113 = vperm.xlu0 %112, %v59
    %v114 = vpop.permute.xlu0 %113
    %117 = vset.pattern.permute.xlu0 0
    %118 = vperm.xlu0 %117, %v60
    %v119 = vpop.permute.xlu0 %118
    %122 = vset.pattern.permute.xlu0 0
    %123 = vperm.xlu0 %122, %v61
    %v124 = vpop.permute.xlu0 %123
    %127 = vset.pattern.permute.xlu0 0
    %128 = vperm.xlu0 %127, %v62
    %v129 = vpop.permute.xlu0 %128
    %132 = vset.pattern.permute.xlu0 0
    %133 = vperm.xlu0 %132, %v63
    %v134 = vpop.permute.xlu0 %133
    %v136 = vmul.f32 %v64, %v79
    %v137 = vmul.f32 %v65, %v84
    %v138 = vmul.f32 %v66, %v89
    %v139 = vmul.f32 %v67, %v94
    %v140 = vmul.f32 %v68, %v99
    %v141 = vmul.f32 %v69, %v104
    %v142 = vmul.f32 %v70, %v109
    %v143 = vmul.f32 %v71, %v114
    %v144 = vmul.f32 %v72, %v119
    %v145 = vmul.f32 %v73, %v124
    %v146 = vmul.f32 %v74, %v129
    %v147 = vmul.f32 %v75, %v134
    %vm148 = vcmask 261120
    %149 = vst.msk [vmem:[#allocation7] sm:$0xff] %vm148, %v136
    %150 = vst.msk [vmem:[#allocation7 + $0x8] sm:$0xff] %vm148, %v137
    %151 = vst.msk [vmem:[#allocation7 + $0x10] sm:$0xff] %vm148, %v138
    %152 = vst.msk [vmem:[#allocation7 + $0x18] sm:$0xff] %vm148, %v139
    %153 = vst.msk [vmem:[#allocation7 + $0x20] sm:$0xff] %vm148, %v140
    %154 = vst.msk [vmem:[#allocation7 + $0x28] sm:$0xff] %vm148, %v141
    %155 = vst.msk [vmem:[#allocation7 + $0x30] sm:$0xff] %vm148, %v142
    %156 = vst.msk [vmem:[#allocation7 + $0x38] sm:$0xff] %vm148, %v143
    %157 = vst.msk [vmem:[#allocation7 + $0x40] sm:$0xff] %vm148, %v144
    %158 = vst.msk [vmem:[#allocation7 + $0x48] sm:$0xff] %vm148, %v145
    %159 = vst.msk [vmem:[#allocation7 + $0x50] sm:$0xff] %vm148, %v146
    %160 = vst.msk [vmem:[#allocation7 + $0x58] sm:$0xff] %vm148, %v147
    // Predicated region
    $region18: #{tpu_custom_call.1} parent=1 // pred_check
      _
    $region19: #{tpu_custom_call.1} parent=1 // pred_check_branch
      %162 = sbr.rel (0) target = $region21
    $region20: #{tpu_custom_call.1} parent=1 // pred_region
      %s164 = ssub.s32 1536, 1536
      %165 = vsyncadd [#allocation4], %s164
      %s166 = sshll.u32 [#allocation7], 4
      %s167 = int_to_ptr.vmem [resolvable:$true] %s166
      %172 = dma.vmem_to_hbm [thread:$0]  %s167, 1536, %s2, [#allocation4], 128, 128, 8
    $region21: #{tpu_custom_call.1} parent=1 // pred_fallthru
      _
    // Predicated region
    $region22: #{tpu_custom_call.1} parent=1 // pred_check
      _
    $region23: #{tpu_custom_call.1} parent=1 // pred_check_branch
      %174 = sbr.rel (0) target = $region25
    $region24: #{tpu_custom_call.1} parent=1 // pred_region
      %175 = dma.done [#allocation4], 1536
    $region25: #{tpu_custom_call.1} parent=1 // pred_fallthru
      _
    %176 = vsyncpa [#allocation3], 1
    %177 = vsyncpa [#allocation6], 1
    %178 = vsyncpa [#allocation4], 1

</llo_original>
